<compile_context>
chip_gen: v7x
topology: tpu7x:2x2x1
jax: 0.10.0
libtpu: 0.0.40
codegen_flags: <defaults>
</compile_context>

<pallas_src>
import functools

import jax
import jax.numpy as jnp
from jax.experimental import pallas as pl
from jax.experimental.pallas import tpu as pltpu


def _round_up(x, m):
    return ((x + m - 1) // m) * m


def _vmem_capacity_bytes():
    try:
        return int(pltpu.get_tpu_info().vmem_capacity_bytes)
    except Exception:
        return 64 * 1024 * 1024  # conservative (v7x per-TC physical VMEM)


def _choose_tile_n(n, c, itemsize):
    """Rows per tile: double-buffered (input + padded target) tiles fit VMEM,
    and each step's input DMA is several microseconds on every generation."""
    c_pad = _round_up(max(c, 1), 128)
    # input row (lane-padded) + i32 target block row padded to 128 lanes (512 B)
    row_bytes = c_pad * itemsize + 512
    vmem_cap = _vmem_capacity_bytes()
    # Keep the 2x double-buffered pipeline within ~half of physical VMEM
    # (<=32 MiB on v7x, <=48 MiB on v5e/v6e) leaving headroom for compiler scratch.
    pipeline_budget = min(vmem_cap // 2, 48 * 1024 * 1024)
    rows_by_budget = max(8, pipeline_budget // (2 * row_bytes))
    # ~12 MiB of input per step; beyond that there is no roofline benefit
    # (v5e especially: don't burn VMEM past a few microseconds of DMA per tile).
    rows_by_step = max(8, (12 * 1024 * 1024) // (c_pad * itemsize))
    tile = min(rows_by_budget, rows_by_step)
    return max(8, (tile // 8) * 8)


def _elbo_partials_kernel(x_ref, tgt_ref, loss_ref, cnt_ref, *, n_total, tile_n):
    i = pl.program_id(0)

    x = x_ref[...]                       # (tile_n, C) log-probs (f32 or bf16)
    tgt = tgt_ref[...]                   # (tile_n, 1) i32 targets (-1 == ignore_index)
    tn, c = x.shape

    if n_total % tile_n != 0:
        # Partial boundary block: fold the row-bounds mask into the target
        # column (cheap (tile_n,1) op) so hit/valid handle it automatically.
        row_ids = i * tile_n + jax.lax.broadcasted_iota(jnp.int32, (tn, 1), 0)
        tgt = jnp.where(row_ids < n_total, tgt, jnp.int32(-1))

    # One-hot "gather" via lane iota; target == -1 never matches a class id.
    class_ids = jax.lax.broadcasted_iota(jnp.int32, (tn, c), dimension=1)
    hit = class_ids == tgt                               # (tile_n, C) bool
    valid = tgt != -1                                    # (tile_n, 1) bool

    # Select + per-row class reduce in the input dtype (exact: <=1 non-zero per
    # row), then upcast only the (tile_n,1) column to f32 for accumulation.
    masked = jnp.where(hit, x, jnp.zeros_like(x))
    picked_row = jnp.sum(masked, axis=-1, keepdims=True)  # (tile_n, 1)

    loss_ref[...] = jnp.sum(picked_row.astype(jnp.float32)).reshape(1, 1, 1)
    cnt_ref[...] = jnp.sum(valid.astype(jnp.float32)).reshape(1, 1, 1)


def elbo_pallas(inputs, target, kl_loss, beta, train_size, *,
                tile_rows=None, force_pallas=False):
    """inputs: (N, C) f32/bf16 log-probs, target: (N,) int, kl_loss/beta: scalars."""
    n, c = inputs.shape
    itemsize = jnp.dtype(inputs.dtype).itemsize

    # Small-problem dispatch: for C < 128 every VMEM sublane row is mostly
    # padding and the run is launch/step-overhead bound -> fused XLA is faster.
    if not force_pallas and (c < 128 or n * c * itemsize < (2 << 20)):
        return elbo_ref(inputs, target, kl_loss, beta, train_size)

    tgt2d = target.astype(jnp.int32).reshape(n, 1)

    tile_n = _choose_tile_n(n, c, itemsize) if tile_rows is None else int(tile_rows)
    if tile_n >= n:
        tile_n = n                        # full-dim block is always layout-legal
    else:
        tile_n = max(8, (tile_n // 8) * 8)
    num_tiles = pl.cdiv(n, tile_n)

    c_pad = _round_up(c, 128)
    tile_bytes = tile_n * (c_pad * itemsize + 512)        # input + padded target
    vmem_cap = _vmem_capacity_bytes()
    vmem_limit = min(vmem_cap, max(32 * 1024 * 1024, 2 * tile_bytes + (16 << 20)))

    kernel = functools.partial(_elbo_partials_kernel, n_total=n, tile_n=tile_n)

    loss_part, cnt_part = pl.pallas_call(
        kernel,
        out_shape=(
            jax.ShapeDtypeStruct((num_tiles, 1, 1), jnp.float32),   # picked log-prob sums
            jax.ShapeDtypeStruct((num_tiles, 1, 1), jnp.float32),   # valid-row counts
        ),
        grid_spec=pltpu.PrefetchScalarGridSpec(
            num_scalar_prefetch=0,
            grid=(num_tiles,),
            in_specs=[
                pl.BlockSpec((tile_n, c), lambda i: (i, 0)),        # streamed rows
                pl.BlockSpec((tile_n, 1), lambda i: (i, 0)),        # targets
            ],
            out_specs=[
                pl.BlockSpec((1, 1, 1), lambda i: (i, 0, 0)),
                pl.BlockSpec((1, 1, 1), lambda i: (i, 0, 0)),
            ],
        ),
        compiler_params=pltpu.CompilerParams(
            dimension_semantics=("parallel",),    # per-tile outputs: no carried state
            vmem_limit_bytes=int(vmem_limit),
        ),
    )(inputs, tgt2d)

    # Finalize in the wrapper (trivial XLA): mean NLL over non-ignored rows
    # (NaN if count == 0, matching PyTorch), scale, add beta * kl.
    loss_sum = jnp.sum(loss_part)
    count = jnp.sum(cnt_part)
    nll = -loss_sum / count
    return (nll * jnp.float32(train_size)
            + jnp.asarray(beta, jnp.float32) * jnp.asarray(kl_loss, jnp.float32))


def elbo_ref(inputs, target, kl_loss, beta, train_size):
    """Pure-JAX reference matching F.nll_loss(reduction='mean', ignore_index=-1)."""
    x = inputs.astype(jnp.float32)
    tgt = target.astype(jnp.int32)
    valid = tgt != -1
    safe_tgt = jnp.where(valid, tgt, 0)
    picked = jnp.take_along_axis(x, safe_tgt[:, None], axis=1)[:, 0]
    loss_sum = jnp.sum(-picked * valid.astype(jnp.float32))
    count = jnp.sum(valid.astype(jnp.float32))
    nll = loss_sum / count
    return (nll * jnp.float32(train_size)
            + jnp.asarray(beta, jnp.float32) * jnp.asarray(kl_loss, jnp.float32))


if __name__ == "__main__":
    key = jax.random.PRNGKey(0)
    train_size = 1000
    kl_loss = jnp.float32(3.25)
    beta = jnp.float32(0.1)

    # Test 1: small shapes implied by the module (single tile, f32).
    N, C = 16, 10
    k1, k2, k3, k4, k5, k6 = jax.random.split(key, 6)
    logits = jax.random.normal(k1, (N, C), dtype=jnp.float32)
    log_probs = jax.nn.log_softmax(logits, axis=-1)         # nll_loss expects log-probs
    target = jax.random.randint(k2, (N,), 0, C, dtype=jnp.int32)
    target = target.at[0].set(-1).at[7].set(-1)             # some ignore_index rows

    out = elbo_pallas(log_probs, target, kl_loss, beta, train_size, force_pallas=True)
    out = jax.block_until_ready(out)
    ref = elbo_ref(log_probs, target, kl_loss, beta, train_size)
    assert jnp.allclose(out, ref, rtol=1e-5, atol=1e-4), (out, ref)

    # The small-problem dispatch path (no force) must agree too.
    out_d = jax.block_until_ready(elbo_pallas(log_probs, target, kl_loss, beta, train_size))
    assert jnp.allclose(out_d, ref, rtol=1e-5, atol=1e-4), (out_d, ref)

    # Test 2: multi-tile "parallel" grid with a partial boundary block.
    N2, C2 = 1000, 12
    logits2 = jax.random.normal(k3, (N2, C2), dtype=jnp.float32)
    log_probs2 = jax.nn.log_softmax(logits2, axis=-1)
    target2 = jax.random.randint(k4, (N2,), -1, C2, dtype=jnp.int32)   # includes -1s

    out2 = elbo_pallas(log_probs2, target2, kl_loss, beta, train_size,
                       tile_rows=128, force_pallas=True)
    out2 = jax.block_until_ready(out2)
    ref2 = elbo_ref(log_probs2, target2, kl_loss, beta, train_size)
    assert jnp.allclose(out2, ref2, rtol=1e-5, atol=1e-4), (out2, ref2)

    # Test 3: bf16 streaming path, multiple full tiles.
    N3, C3 = 2048, 40
    logits3 = jax.random.normal(k5, (N3, C3), dtype=jnp.float32)
    log_probs3 = jax.nn.log_softmax(logits3, axis=-1).astype(jnp.bfloat16)
    target3 = jax.random.randint(k6, (N3,), -1, C3, dtype=jnp.int32)

    out3 = elbo_pallas(log_probs3, target3, kl_loss, beta, train_size,
                       tile_rows=512, force_pallas=True)
    out3 = jax.block_until_ready(out3)
    ref3 = elbo_ref(log_probs3, target3, kl_loss, beta, train_size)
    assert jnp.allclose(out3, ref3, rtol=2e-3, atol=1e-1), (out3, ref3)

    print("KERNEL_OK")
</pallas_src>

<mosaic_0001>
module attributes {stable_mosaic.version = 11 : i64} {
  func.func @_elbo_partials_kernel(%arg0: i32, %arg1: memref<16x10xf32, #tpu.memory_space<vmem>>, %arg2: memref<16x1xi32, #tpu.memory_space<vmem>>, %arg3: memref<1x1x1xf32, #tpu.memory_space<vmem>>, %arg4: memref<1x1x1xf32, #tpu.memory_space<vmem>>) attributes {dimension_semantics = [#tpu.dimension_semantics<parallel>], iteration_bounds = array<i64: 1>, scalar_prefetch = 0 : i64, scratch_operands = 0 : i64, tpu.core_type = #tpu.core_type<tc>, window_params = [{transform_indices = @transform_0, window_bounds = array<i64: 16, 10>}, {transform_indices = @transform_1, window_bounds = array<i64: 16, 1>}, {transform_indices = @transform_2, window_bounds = array<i64: 1, 1, 1>}, {transform_indices = @transform_3, window_bounds = array<i64: 1, 1, 1>}]} {
    %c0 = arith.constant 0 : index
    %c0_0 = arith.constant 0 : index
    %0 = vector.load %arg1[%c0, %c0_0] : memref<16x10xf32, #tpu.memory_space<vmem>>, vector<16x10xf32>
    %c0_1 = arith.constant 0 : index
    %c0_2 = arith.constant 0 : index
    %1 = vector.load %arg2[%c0_1, %c0_2] : memref<16x1xi32, #tpu.memory_space<vmem>>, vector<16x1xi32>
    %2 = tpu.iota {dimensions = array<i32: 1>} : vector<16x10xi32>
    %3 = vector.broadcast %1 : vector<16x1xi32> to vector<16x10xi32>
    %4 = arith.cmpi eq, %2, %3 : vector<16x10xi32>
    %c-1_i32 = arith.constant -1 : i32
    %5 = vector.broadcast %c-1_i32 : i32 to vector<16x1xi32>
    %6 = arith.cmpi ne, %1, %5 : vector<16x1xi32>
    %cst = arith.constant 0.000000e+00 : f32
    %7 = vector.broadcast %cst : f32 to vector<16x10xf32>
    %8 = arith.select %4, %0, %7 : vector<16x10xi1>, vector<16x10xf32>
    %cst_3 = arith.constant dense<0.000000e+00> : vector<16xf32>
    %9 = vector.multi_reduction <add>, %8, %cst_3 [1] : vector<16x10xf32> to vector<16xf32>
    %10 = vector.shape_cast %9 : vector<16xf32> to vector<16x1xf32>
    %11 = vector.shape_cast %10 : vector<16x1xf32> to vector<1x16x1xf32>
    %cst_4 = arith.constant dense<0.000000e+00> : vector<1xf32>
    %12 = vector.multi_reduction <add>, %11, %cst_4 [1, 2] : vector<1x16x1xf32> to vector<1xf32>
    %13 = vector.shape_cast %12 : vector<1xf32> to vector<1x1x1xf32>
    %14 = vector.extract %13[0, 0, 0] : f32 from vector<1x1x1xf32>
    %15 = vector.broadcast %14 : f32 to vector<1x1x1xf32>
    %c0_5 = arith.constant 0 : index
    %c0_6 = arith.constant 0 : index
    %c0_7 = arith.constant 0 : index
    %16 = vector.load %arg3[%c0_5, %c0_6, %c0_7] : memref<1x1x1xf32, #tpu.memory_space<vmem>>, vector<1x1x1xf32>
    tpu.vector_store %arg3[%c0_5, %c0_6, %c0_7], %15 {strides = array<i32>} : memref<1x1x1xf32, #tpu.memory_space<vmem>>, vector<1x1x1xf32>,
    %17 = arith.extui %6 : vector<16x1xi1> to vector<16x1xi32>
    %18 = arith.sitofp %17 : vector<16x1xi32> to vector<16x1xf32>
    %19 = vector.shape_cast %18 : vector<16x1xf32> to vector<1x16x1xf32>
    %cst_8 = arith.constant dense<0.000000e+00> : vector<1xf32>
    %20 = vector.multi_reduction <add>, %19, %cst_8 [1, 2] : vector<1x16x1xf32> to vector<1xf32>
    %21 = vector.shape_cast %20 : vector<1xf32> to vector<1x1x1xf32>
    %22 = vector.extract %21[0, 0, 0] : f32 from vector<1x1x1xf32>
    %23 = vector.broadcast %22 : f32 to vector<1x1x1xf32>
    %c0_9 = arith.constant 0 : index
    %c0_10 = arith.constant 0 : index
    %c0_11 = arith.constant 0 : index
    %24 = vector.load %arg4[%c0_9, %c0_10, %c0_11] : memref<1x1x1xf32, #tpu.memory_space<vmem>>, vector<1x1x1xf32>
    tpu.vector_store %arg4[%c0_9, %c0_10, %c0_11], %23 {strides = array<i32>} : memref<1x1x1xf32, #tpu.memory_space<vmem>>, vector<1x1x1xf32>,
    return
  }
  func.func @transform_0(%arg0: i32) -> (i32, i32) {
    %c0_i32 = arith.constant 0 : i32
    %c0_i32_0 = arith.constant 0 : i32
    return %arg0, %c0_i32 : i32, i32
  }
  func.func @transform_1(%arg0: i32) -> (i32, i32) {
    %c0_i32 = arith.constant 0 : i32
    %c0_i32_0 = arith.constant 0 : i32
    return %arg0, %c0_i32 : i32, i32
  }
  func.func @transform_2(%arg0: i32) -> (i32, i32, i32) {
    %c0_i32 = arith.constant 0 : i32
    %c0_i32_0 = arith.constant 0 : i32
    %c0_i32_1 = arith.constant 0 : i32
    return %arg0, %c0_i32, %c0_i32_0 : i32, i32, i32
  }
  func.func @transform_3(%arg0: i32) -> (i32, i32, i32) {
    %c0_i32 = arith.constant 0 : i32
    %c0_i32_0 = arith.constant 0 : i32
    %c0_i32_1 = arith.constant 0 : i32
    return %arg0, %c0_i32, %c0_i32_0 : i32, i32, i32
  }
}

</mosaic_0001>

<llo_original>
// kernel: tpu_custom_call.1
$region0: #{tpu_custom_call.1}
  #allocation0 [shape = 'u32[]', space=smem, size = 0x4, offset = 0x4, fixed_abs, tag = 'smem constant byte address 0x4 - core index']
  #allocation1 [shape = 'u32[144,128]{1,0:T(1,128)}', space=vmem, size = 0x12000, scoped, tag = 'internal scratch']
  %s0 = inlined_call_operand.vmem [shape: f32[16,10], index: 0, kind: input, shape index: {}]
  %s1 = inlined_call_operand.vmem [shape: s32[16,1], index: 1, kind: input, shape index: {}]
  %s2 = inlined_call_operand.hbm [shape: f32[1,1,1], index: 2, kind: output, shape index: {0}]
  %s3 = inlined_call_operand.hbm [shape: f32[1,1,1], index: 3, kind: output, shape index: {1}]
  %4 = xla_tuple %s2, %s3
  %s5 = sld [smem:[#allocation0]]
  $region26: #{tpu_custom_call.1} parent=0
    _
  %s7 = ssub.s32 1, %s5
  %s8 = scalar_select 0, %s7, %s5
  $region1: #{tpu_custom_call.1} parent=0
    #allocation2 [shape = 'u8[512]{0}', space=vmem, size = 0x400, scoped, tag = 'output window, operand 0, single buffered']
    #allocation3 [shape = 's32[1]{0}', space=sflag, size = 0x4, scoped, tag = 'scoped memory for tpu_custom_call.1']
    #allocation4 [shape = 'u8[512]{0}', space=vmem, size = 0x400, scoped, tag = 'output window, operand 1, single buffered']
    #allocation5 [shape = 's32[1]{0}', space=sflag, size = 0x4, scoped, tag = 'scoped memory for tpu_custom_call.1']
    %9 = vsyncpa [#allocation3], 0
    %10 = vsyncpa [#allocation5], 0
    // Predicated region
    $region2: #{tpu_custom_call.1} parent=1 // pred_check
      _
    $region3: #{tpu_custom_call.1} parent=1 // pred_check_branch
      %12 = sbr.rel (0) target = $region5
    $region4: #{tpu_custom_call.1} parent=1 // pred_region
      _
    $region5: #{tpu_custom_call.1} parent=1 // pred_fallthru
      _
    // Predicated region
    $region6: #{tpu_custom_call.1} parent=1 // pred_check
      _
    $region7: #{tpu_custom_call.1} parent=1 // pred_check_branch
      %14 = sbr.rel (0) target = $region9
    $region8: #{tpu_custom_call.1} parent=1 // pred_region
      _
    $region9: #{tpu_custom_call.1} parent=1 // pred_fallthru
      _
    %v15 = vld [vmem:[%s0] sm:$0xff]
    %v16 = vld [vmem:[%s0 + $0x8] sm:$0xff]
    %v17 = vld [vmem:[%s1] sm:$0xff]
    %v18 = vld [vmem:[%s1 + $0x8] sm:$0xff]
    %v19 = vlaneseq
    %v20 = vand.u32 %v19, 127
    %21 = vset.pattern.permute.xlu0 0
    %22 = vperm.xlu0 %21, %v17
    %v23 = vpop.permute.xlu0 %22
    %24 = vset.pattern.permute.xlu0 0
    %25 = vperm.xlu0 %24, %v18
    %v26 = vpop.permute.xlu0 %25
    %vm27 = vcmp.eq.s32.totalorder %v20, %v23
    %vm28 = vcmp.eq.s32.totalorder %v20, %v26
    %vm29 = vcmp.ne.s32.totalorder %v17, 4294967295
    %vm30 = vcmp.ne.s32.totalorder %v18, 4294967295
    %v31 = vsel %vm27, %v15, 0.0
    %v32 = vsel %vm28, %v16, 0.0
    %vm33 = vcmask 80896
    %v34 = vsel %vm33, %v31, 0.0
    %35 = vadd.xlane.f32.xlu0 %v34
    %v36 = vpop.xlane.xlu0 %35
    %v37 = vsel %vm33, %v32, 0.0
    %38 = vadd.xlane.f32.xlu0 %v37
    %v39 = vpop.xlane.xlu0 %38
    %vm40 = vcmask 7168
    %v41 = vsel %vm40, %v36, 0.0
    %v42 = vsel %vm40, %v39, 0.0
    %v43 = vadd.f32 %v41, %v42
    %44 = vadd.xlane.f32.xlu0 %v43
    %v45 = vpop.xlane.xlu0 %44
    %v46 = vrot.slane %v45, 4
    %v47 = vadd.f32 %v45, %v46
    %v48 = vrot.slane %v47, 2
    %v49 = vadd.f32 %v47, %v48
    %v50 = vrot.slane %v49, 1
    %v51 = vadd.f32 %v49, %v50
    %s52 = vtos %v51
    %v53 = vstv %s52
    %vm54 = vcmask 0
    %55 = vst.msk [vmem:[#allocation2] sm:$0x1] %vm54, %v53
    %v56 = vsel %vm29, 1, 0
    %v57 = vsel %vm30, 1, 0
    %v58 = vcvt.s32.f32 %v56
    %v59 = vcvt.s32.f32 %v57
    %v60 = vsel %vm40, %v58, 0.0
    %v61 = vsel %vm40, %v59, 0.0
    %v62 = vadd.f32 %v60, %v61
    %63 = vadd.xlane.f32.xlu0 %v62
    %v64 = vpop.xlane.xlu0 %63
    %v65 = vrot.slane %v64, 4
    %v66 = vadd.f32 %v64, %v65
    %v67 = vrot.slane %v66, 2
    %v68 = vadd.f32 %v66, %v67
    %v69 = vrot.slane %v68, 1
    %v70 = vadd.f32 %v68, %v69
    %s71 = vtos %v70
    %v72 = vstv %s71
    %73 = vst.msk [vmem:[#allocation4] sm:$0x1] %vm54, %v72
    // Predicated region
    $region10: #{tpu_custom_call.1} parent=1 // pred_check
      _
    $region11: #{tpu_custom_call.1} parent=1 // pred_check_branch
      %75 = sbr.rel (0) target = $region13
    $region12: #{tpu_custom_call.1} parent=1 // pred_region
      %s77 = ssub.s32 16, 16
      %78 = vsyncadd [#allocation3], %s77
      %s80 = sshll.u32 [#allocation2], 4
      %s81 = int_to_ptr.vmem [resolvable:$true] %s80
      %83 = dma.vmem_to_hbm [thread:$0]  %s81, 16, %s2, [#allocation3]
    $region13: #{tpu_custom_call.1} parent=1 // pred_fallthru
      _
    // Predicated region
    $region14: #{tpu_custom_call.1} parent=1 // pred_check
      _
    $region15: #{tpu_custom_call.1} parent=1 // pred_check_branch
      %85 = sbr.rel (0) target = $region17
    $region16: #{tpu_custom_call.1} parent=1 // pred_region
      %s87 = ssub.s32 16, 16
      %88 = vsyncadd [#allocation5], %s87
      %s90 = sshll.u32 [#allocation4], 4
      %s91 = int_to_ptr.vmem [resolvable:$true] %s90
      %93 = dma.vmem_to_hbm [thread:$0]  %s91, 16, %s3, [#allocation5]
    $region17: #{tpu_custom_call.1} parent=1 // pred_fallthru
      _
    // Predicated region
    $region18: #{tpu_custom_call.1} parent=1 // pred_check
      _
    $region19: #{tpu_custom_call.1} parent=1 // pred_check_branch
      %95 = sbr.rel (0) target = $region21
    $region20: #{tpu_custom_call.1} parent=1 // pred_region
      %96 = dma.done [#allocation3], 16
    $region21: #{tpu_custom_call.1} parent=1 // pred_fallthru
      _
    // Predicated region
    $region22: #{tpu_custom_call.1} parent=1 // pred_check
      _
    $region23: #{tpu_custom_call.1} parent=1 // pred_check_branch
      %98 = sbr.rel (0) target = $region25
    $region24: #{tpu_custom_call.1} parent=1 // pred_region
      %99 = dma.done [#allocation5], 16
    $region25: #{tpu_custom_call.1} parent=1 // pred_fallthru
      _
    %100 = vsyncpa [#allocation3], 1
    %101 = vsyncpa [#allocation5], 1

</llo_original>
